<compile_context>
chip_gen: v7x
topology: tpu7x:2x2x1
jax: 0.10.0
libtpu: 0.0.40
codegen_flags: <defaults>
</compile_context>

<pallas_src>
import functools
from typing import NamedTuple

import numpy as np
import jax
import jax.numpy as jnp
from jax.experimental import pallas as pl
from jax.experimental.pallas import tpu as pltpu


def _round_up(x: int, m: int) -> int:
    return -(-x // m) * m


def _cdiv(a: int, b: int) -> int:
    return -(-a // b)


class PreparedBases(NamedTuple):
    u_stacked: jax.Array   # (G, d_pad, r_pad), zero-padded
    d_list: tuple
    r_list: tuple
    d_pad: int
    r_pad: int


def prepare_col_ortho_bases(u_list, dtype=None) -> PreparedBases:
    """Pad & stack the fixed bases ONCE; reuse across loss calls (moving_base=False)."""
    assert len(u_list) > 0
    d_list = tuple(int(u.shape[0]) for u in u_list)
    r_list = tuple(int(u.shape[1]) for u in u_list)
    u_dtype = jnp.dtype(dtype) if dtype is not None else jnp.result_type(*[u.dtype for u in u_list])
    d_pad = _round_up(max(d_list), 128)
    r_pad = _round_up(max(r_list), 128)
    parts = []
    for u in u_list:
        p = jnp.pad(u.astype(u_dtype),
                    ((0, d_pad - int(u.shape[0])), (0, r_pad - int(u.shape[1]))))
        parts.append(p[None])
    u_stacked = jnp.concatenate(parts, axis=0) if len(parts) > 1 else parts[0]
    return PreparedBases(u_stacked, d_list, r_list, d_pad, r_pad)


def _col_ortho_kernel(gid_ref, first_ref, t_ref, u_ref, o_ref, proj_ref, *, bps):
    """One (split, row-block, d-block) step.

    t_ref:    (row_block, d_block)  feature tile of concatenated groups.
    u_ref:    (d_block, r_pad)      basis slice of the current block's group.
    o_ref:    (8, r_pad)            per-(split, group) sublane accumulator.
    proj_ref: (row_block, r_pad)    f32 scratch accumulating partial t@U over k.
    """
    s = pl.program_id(0)
    i = pl.program_id(1)
    k = pl.program_id(2)
    nk = pl.num_programs(2)
    b = s * bps + i   # global block index (gid_ref used by index_maps; first_ref here)

    # Zero the per-(split, group) accumulator at the first block of each group.
    @pl.when(jnp.logical_and(first_ref[b] == 1, k == 0))
    def _():
        o_ref[...] = jnp.zeros_like(o_ref)

    # MXU matmul, f32 accumulation regardless of input dtype (bf16 or f32).
    part = jnp.dot(t_ref[...], u_ref[...], preferred_element_type=jnp.float32)

    @pl.when(k == 0)
    def _():
        proj_ref[...] = part

    @pl.when(k > 0)
    def _():
        proj_ref[...] += part

    # Only on the last feature-dim block: square and reduce rows down to an
    # 8-sublane partial (pure vreg-wise VALU adds; no cross-lane XLU reduce,
    # no masked single-sublane stores).  Final reduce/clamp happens in wrapper.
    @pl.when(k == nk - 1)
    def _():
        p = proj_ref[...]
        sq = p * p
        rb, rp = sq.shape
        o_ref[...] += sq.reshape(rb // 8, 8, rp).sum(axis=0)


def col_ortho_loss(t_list, u_bases, *, margin=0.0, max_row_block=512, num_splits=2):
    """Full ColOrthLoss forward (moving_base=False): mean over list entries.

    `u_bases` may be a PreparedBases (preferred: prepare once, reuse every call)
    or a raw list of (D, r) basis arrays.
    """
    if not isinstance(u_bases, PreparedBases):
        u_bases = prepare_col_ortho_bases(u_bases)

    assert len(t_list) == len(u_bases.d_list) and len(t_list) > 0
    num_groups = len(t_list)
    n_list = [int(t.shape[0]) for t in t_list]
    for t, d in zip(t_list, u_bases.d_list):
        assert int(t.shape[1]) == d

    # Unify dtypes (no-op when everything already matches the prepared bases).
    dtype = jnp.result_type(*([t.dtype for t in t_list] + [u_bases.u_stacked.dtype]))
    u_stacked = u_bases.u_stacked.astype(dtype)
    d_pad, r_pad = u_bases.d_pad, u_bases.r_pad
    itemsize = jnp.dtype(dtype).itemsize
    sublane = max(8, 32 // itemsize)          # 8 f32 / 16 bf16 / 32 int8

    # --- Row tile: >= ~1 MiB per t DMA when D is small, dtype-sublane aligned,
    #     capped by the largest group so tiny inputs aren't over-padded.
    max_n = max(n_list)
    bytes_per_row = max(1, d_pad * itemsize)
    rows_target = max(int(max_row_block), _cdiv(1 << 20, bytes_per_row))
    rows_target = min(rows_target, 2048)
    row_block = min(_round_up(rows_target, sublane), _round_up(max_n, sublane))
    row_block = max(sublane, row_block)

    # --- VMEM budget (per generation) and feature-dim blocking.
    try:
        info = pltpu.get_tpu_info()
        vmem_cap = int(getattr(info, "vmem_capacity_bytes", 64 * 1024 * 1024))
    except Exception:
        vmem_cap = 64 * 1024 * 1024
    vmem_ceiling = int(vmem_cap * 0.78)       # ~50 MiB on v7x, ~100 MiB on v5e/v6e

    def step_bytes(rb, db):
        return (2 * rb * db * itemsize        # double-buffered t tile
                + 2 * db * r_pad * itemsize   # double-buffered U tile
                + 3 * rb * r_pad * 4          # f32 proj scratch + sq intermediates
                + 2 * 8 * r_pad * 4           # output block
                + (2 << 20))                  # Mosaic internal scratch headroom

    while row_block > sublane and step_bytes(row_block, 128) > vmem_ceiling:
        row_block = max(sublane, _round_up(row_block // 2, sublane))

    units = d_pad // 128
    d_block = 128
    for m in range(units, 0, -1):             # largest 128-multiple divisor of d_pad that fits
        if units % m == 0 and step_bytes(row_block, 128 * m) <= vmem_ceiling:
            d_block = 128 * m
            break
    d_blocks = d_pad // d_block
    vmem_limit = int(min(vmem_ceiling, max(32 * 1024 * 1024, step_bytes(row_block, d_block))))

    # --- Ragged concatenation: each group padded only to a multiple of row_block.
    blocks_per_group = [_cdiv(n, row_block) for n in n_list]
    t_parts = []
    for t, n, bg in zip(t_list, n_list, blocks_per_group):
        rows_pad = bg * row_block
        t_parts.append(jnp.pad(t.astype(dtype),
                               ((0, rows_pad - n), (0, d_pad - int(t.shape[1])))))
    total_blocks = sum(blocks_per_group)
    bps = _cdiv(total_blocks, num_splits)                  # blocks per split
    total_blocks_padded = bps * num_splits
    pad_blocks = total_blocks_padded - total_blocks
    if pad_blocks:
        # Dummy zero blocks (assigned to the last group; contribute exactly 0).
        t_parts.append(jnp.zeros((pad_blocks * row_block, d_pad), dtype=dtype))
    t_concat = jnp.concatenate(t_parts, axis=0) if len(t_parts) > 1 else t_parts[0]

    # --- Scalar-prefetch tables: per-block group id and first-block-of-group flag.
    gid_np = np.repeat(np.arange(num_groups, dtype=np.int32),
                       np.asarray(blocks_per_group, dtype=np.int64))
    if pad_blocks:
        gid_np = np.concatenate([gid_np, np.full((pad_blocks,), num_groups - 1, np.int32)])
    gid2 = gid_np.reshape(num_splits, bps)
    first2 = np.zeros_like(gid2)
    first2[:, 0] = 1
    if bps > 1:
        first2[:, 1:] = (gid2[:, 1:] != gid2[:, :-1]).astype(np.int32)
    gid_tbl = jnp.asarray(gid_np.reshape(-1))
    first_tbl = jnp.asarray(first2.reshape(-1))

    valid = np.zeros((num_splits, num_groups), dtype=bool)
    for s_ in range(num_splits):
        valid[s_, np.unique(gid2[s_])] = True
    valid_mask = jnp.asarray(valid)

    # --- Cost estimate so XLA can overlap this kernel with surrounding work.
    flops = 2 * total_blocks_padded * row_block * d_pad * r_pad
    bytes_accessed = (total_blocks_padded * row_block * d_pad * itemsize
                      + num_groups * d_pad * r_pad * itemsize
                      + num_splits * num_groups * 8 * r_pad * 4)
    cost = pl.CostEstimate(flops=int(flops), transcendentals=0,
                           bytes_accessed=int(bytes_accessed))

    kernel = functools.partial(_col_ortho_kernel, bps=bps)

    partials = pl.pallas_call(
        kernel,
        out_shape=jax.ShapeDtypeStruct((num_splits, num_groups, 8, r_pad), jnp.float32),
        grid_spec=pltpu.PrefetchScalarGridSpec(
            num_scalar_prefetch=2,
            grid=(num_splits, bps, d_blocks),
            in_specs=[
                # Row block (s*bps + i) of the concatenated features, d-block k.
                pl.BlockSpec((row_block, d_block),
                             lambda s, i, k, gid, first: (s * bps + i, k)),
                # Basis d-block of the current block's group (resident across
                # all row blocks of the group).
                pl.BlockSpec((None, d_block, r_pad),
                             lambda s, i, k, gid, first: (gid[s * bps + i], k, 0)),
            ],
            # Same output block for every (row, k) step of a group within a
            # split -> VMEM-resident accumulator.
            out_specs=pl.BlockSpec((None, None, 8, r_pad),
                                   lambda s, i, k, gid, first: (s, gid[s * bps + i], 0, 0)),
            scratch_shapes=[pltpu.VMEM((row_block, r_pad), jnp.float32)],
        ),
        compiler_params=pltpu.CompilerParams(
            dimension_semantics=("parallel", "arbitrary", "arbitrary"),
            vmem_limit_bytes=vmem_limit,
        ),
        cost_estimate=cost,
    )(gid_tbl, first_tbl, t_concat, u_stacked)

    # --- Finalize (tiny): drop never-visited split slots, reduce, clamp, divide, mean.
    per_slot = jnp.where(valid_mask[:, :, None, None], partials, 0.0)
    totals = per_slot.sum(axis=(0, 2, 3))                              # (G,)
    n_rows = jnp.asarray(n_list, dtype=jnp.float32)
    losses = jnp.maximum(totals - jnp.float32(margin), 0.0) / n_rows   # (G,)
    return jnp.mean(losses)


def _reference_loss(t_list, u_list, margin=0.0):
    loss = 0.0
    for t, u in zip(t_list, u_list):
        proj = jnp.matmul(t.astype(jnp.float32), u.astype(jnp.float32))
        con = jnp.maximum(jnp.sum(proj ** 2) - margin, 0.0)
        loss = loss + con / t.shape[0]
    return loss / len(t_list)


if __name__ == "__main__":
    key = jax.random.PRNGKey(0)

    # Small synthetic shapes: 3 feature groups with (N, D) targets and (D, r) bases.
    specs = [
        (16, 32, 8),   # (N, D, r)
        (16, 64, 16),
        (16, 48, 12),
    ]
    t_list, u_list = [], []
    for (n, d, r) in specs:
        key, k1, k2 = jax.random.split(key, 3)
        t_list.append(jax.random.normal(k1, (n, d), dtype=jnp.float32))
        u_list.append(jax.random.normal(k2, (d, r), dtype=jnp.float32) * 0.1)

    # Prepare (pad + stack) the fixed bases ONCE; reuse across calls.
    prepared = prepare_col_ortho_bases(u_list)

    # f32 inputs, margin = 0.
    loss = jax.block_until_ready(col_ortho_loss(t_list, prepared, margin=0.0))
    ref = _reference_loss(t_list, u_list, margin=0.0)
    assert jnp.allclose(loss, ref, rtol=1e-4, atol=1e-6), (loss, ref)

    # f32 inputs, non-zero margin (per-group clamp path), reusing cached bases.
    loss_m = jax.block_until_ready(col_ortho_loss(t_list, prepared, margin=0.5))
    ref_m = _reference_loss(t_list, u_list, margin=0.5)
    assert jnp.allclose(loss_m, ref_m, rtol=1e-4, atol=1e-6), (loss_m, ref_m)

    # bf16 inputs (half the HBM traffic), f32 accumulation in the kernel.
    # Note: bf16 operands are multiplied in bf16 on the MXU, so results differ
    # from the f32-upcast reference by bf16 rounding only.
    t_bf = [t.astype(jnp.bfloat16) for t in t_list]
    u_bf = [u.astype(jnp.bfloat16) for u in u_list]
    prepared_bf = prepare_col_ortho_bases(u_bf)
    loss_bf = jax.block_until_ready(col_ortho_loss(t_bf, prepared_bf, margin=0.0))
    ref_bf = _reference_loss(t_bf, u_bf, margin=0.0)
    assert jnp.allclose(loss_bf, ref_bf, rtol=2e-2, atol=1e-5), (loss_bf, ref_bf)

    # Ragged group sizes (exercises the scalar-prefetch block tables: no padding
    # of every group up to max_n).
    rag_specs = [(8, 32, 8), (24, 64, 16), (40, 48, 12)]
    t_rag, u_rag = [], []
    for (n, d, r) in rag_specs:
        key, k1, k2 = jax.random.split(key, 3)
        t_rag.append(jax.random.normal(k1, (n, d), dtype=jnp.float32))
        u_rag.append(jax.random.normal(k2, (d, r), dtype=jnp.float32) * 0.1)
    prep_rag = prepare_col_ortho_bases(u_rag)
    loss_rag = jax.block_until_ready(col_ortho_loss(t_rag, prep_rag, margin=0.1))
    ref_rag = _reference_loss(t_rag, u_rag, margin=0.1)
    assert jnp.allclose(loss_rag, ref_rag, rtol=1e-4, atol=1e-6), (loss_rag, ref_rag)

    print("KERNEL_OK")
</pallas_src>

<mosaic_0001>
module attributes {stable_mosaic.version = 11 : i64} {
  func.func @_col_ortho_kernel(%arg0: i32, %arg1: i32, %arg2: i32, %arg3: memref<4xi32, #tpu.memory_space<smem>>, %arg4: memref<4xi32, #tpu.memory_space<smem>>, %arg5: memref<16x128xf32, #tpu.memory_space<vmem>>, %arg6: memref<1x128x128xf32, #tpu.memory_space<vmem>>, %arg7: memref<1x1x8x128xf32, #tpu.memory_space<vmem>>, %arg8: memref<16x128xf32, #tpu.memory_space<vmem>>) attributes {dimension_semantics = [#tpu.dimension_semantics<parallel>, #tpu.dimension_semantics<arbitrary>, #tpu.dimension_semantics<arbitrary>], iteration_bounds = array<i64: 2, 2, 1>, scalar_prefetch = 2 : i64, scratch_operands = 1 : i64, tpu.core_type = #tpu.core_type<tc>, window_params = [{transform_indices = @transform_0, window_bounds = array<i64: 16, 128>}, {transform_indices = @transform_1, window_bounds = array<i64: 1, 128, 128>}, {transform_indices = @transform_2, window_bounds = array<i64: 1, 1, 8, 128>}]} {
    %c2_i32 = arith.constant 2 : i32
    %0 = arith.muli %arg0, %c2_i32 : i32
    %1 = arith.addi %0, %arg1 : i32
    %2 = arith.index_cast %1 : i32 to index
    %3 = memref.load %arg4[%2] : memref<4xi32, #tpu.memory_space<smem>>
    %c1_i32 = arith.constant 1 : i32
    %4 = arith.cmpi eq, %3, %c1_i32 : i32
    %c0_i32 = arith.constant 0 : i32
    %5 = arith.cmpi eq, %arg2, %c0_i32 : i32
    %6 = arith.andi %4, %5 : i1
    %7 = arith.extui %6 : i1 to i32
    %c0_i32_0 = arith.constant 0 : i32
    %8 = arith.cmpi ne, %7, %c0_i32_0 : i32
    scf.if %8 {
      %cst_11 = arith.constant 0.000000e+00 : f32
      %22 = vector.broadcast %cst_11 : f32 to vector<8x128xf32>
      %c0_12 = arith.constant 0 : index
      %c0_13 = arith.constant 0 : index
      %c0_14 = arith.constant 0 : index
      %c0_15 = arith.constant 0 : index
      %23 = vector.load %arg7[%c0_12, %c0_13, %c0_14, %c0_15] : memref<1x1x8x128xf32, #tpu.memory_space<vmem>>, vector<1x1x8x128xf32>
      %24 = vector.shape_cast %23 : vector<1x1x8x128xf32> to vector<8x128xf32>
      %25 = vector.shape_cast %22 : vector<8x128xf32> to vector<1x1x8x128xf32>
      tpu.vector_store %arg7[%c0_12, %c0_13, %c0_14, %c0_15], %25 {strides = array<i32>} : memref<1x1x8x128xf32, #tpu.memory_space<vmem>>, vector<1x1x8x128xf32>,
    } else {
    }
    %c0 = arith.constant 0 : index
    %c0_1 = arith.constant 0 : index
    %9 = vector.load %arg5[%c0, %c0_1] : memref<16x128xf32, #tpu.memory_space<vmem>>, vector<16x128xf32>
    %c0_2 = arith.constant 0 : index
    %c0_3 = arith.constant 0 : index
    %c0_4 = arith.constant 0 : index
    %10 = vector.load %arg6[%c0_2, %c0_3, %c0_4] : memref<1x128x128xf32, #tpu.memory_space<vmem>>, vector<1x128x128xf32>
    %11 = vector.shape_cast %10 : vector<1x128x128xf32> to vector<128x128xf32>
    %cst = arith.constant dense<0.000000e+00> : vector<16x128xf32>
    %12 = tpu.matmul %9, %11, %cst {dimension_numbers = #tpu.dot_dimension_numbers<[1], [0], [0], [1], [0, 0, 1, 1], [], []>} : vector<16x128xf32>, vector<128x128xf32>, vector<16x128xf32> -> vector<16x128xf32>
    %c0_i32_5 = arith.constant 0 : i32
    %13 = arith.cmpi eq, %arg2, %c0_i32_5 : i32
    %14 = arith.extui %13 : i1 to i32
    %c0_i32_6 = arith.constant 0 : i32
    %15 = arith.cmpi ne, %14, %c0_i32_6 : i32
    scf.if %15 {
      %c0_11 = arith.constant 0 : index
      %c0_12 = arith.constant 0 : index
      %22 = vector.load %arg8[%c0_11, %c0_12] : memref<16x128xf32, #tpu.memory_space<vmem>>, vector<16x128xf32>
      tpu.vector_store %arg8[%c0_11, %c0_12], %12 {strides = array<i32>} : memref<16x128xf32, #tpu.memory_space<vmem>>, vector<16x128xf32>,
    } else {
    }
    %c0_i32_7 = arith.constant 0 : i32
    %16 = arith.cmpi sgt, %arg2, %c0_i32_7 : i32
    %17 = arith.extui %16 : i1 to i32
    %c0_i32_8 = arith.constant 0 : i32
    %18 = arith.cmpi ne, %17, %c0_i32_8 : i32
    scf.if %18 {
      %c0_11 = arith.constant 0 : index
      %c0_12 = arith.constant 0 : index
      %22 = vector.load %arg8[%c0_11, %c0_12] : memref<16x128xf32, #tpu.memory_space<vmem>>, vector<16x128xf32>
      %23 = arith.addf %22, %12 : vector<16x128xf32>
      %c0_13 = arith.constant 0 : index
      %c0_14 = arith.constant 0 : index
      %24 = vector.load %arg8[%c0_13, %c0_14] : memref<16x128xf32, #tpu.memory_space<vmem>>, vector<16x128xf32>
      tpu.vector_store %arg8[%c0_13, %c0_14], %23 {strides = array<i32>} : memref<16x128xf32, #tpu.memory_space<vmem>>, vector<16x128xf32>,
    } else {
    }
    %c0_i32_9 = arith.constant 0 : i32
    %19 = arith.cmpi eq, %arg2, %c0_i32_9 : i32
    %20 = arith.extui %19 : i1 to i32
    %c0_i32_10 = arith.constant 0 : i32
    %21 = arith.cmpi ne, %20, %c0_i32_10 : i32
    scf.if %21 {
      %c0_11 = arith.constant 0 : index
      %c0_12 = arith.constant 0 : index
      %22 = vector.load %arg8[%c0_11, %c0_12] : memref<16x128xf32, #tpu.memory_space<vmem>>, vector<16x128xf32>
      %23 = arith.mulf %22, %22 : vector<16x128xf32>
      %c0_13 = arith.constant 0 : index
      %c0_14 = arith.constant 0 : index
      %c0_15 = arith.constant 0 : index
      %c0_16 = arith.constant 0 : index
      %24 = vector.load %arg7[%c0_13, %c0_14, %c0_15, %c0_16] : memref<1x1x8x128xf32, #tpu.memory_space<vmem>>, vector<1x1x8x128xf32>
      %25 = vector.shape_cast %24 : vector<1x1x8x128xf32> to vector<8x128xf32>
      %26 = vector.shape_cast %23 : vector<16x128xf32> to vector<2x8x128xf32>
      %cst_17 = arith.constant dense<0.000000e+00> : vector<8x128xf32>
      %27 = vector.multi_reduction <add>, %26, %cst_17 [0] : vector<2x8x128xf32> to vector<8x128xf32>
      %28 = arith.addf %25, %27 : vector<8x128xf32>
      %c0_18 = arith.constant 0 : index
      %c0_19 = arith.constant 0 : index
      %c0_20 = arith.constant 0 : index
      %c0_21 = arith.constant 0 : index
      %29 = vector.load %arg7[%c0_18, %c0_19, %c0_20, %c0_21] : memref<1x1x8x128xf32, #tpu.memory_space<vmem>>, vector<1x1x8x128xf32>
      %30 = vector.shape_cast %29 : vector<1x1x8x128xf32> to vector<8x128xf32>
      %31 = vector.shape_cast %28 : vector<8x128xf32> to vector<1x1x8x128xf32>
      tpu.vector_store %arg7[%c0_18, %c0_19, %c0_20, %c0_21], %31 {strides = array<i32>} : memref<1x1x8x128xf32, #tpu.memory_space<vmem>>, vector<1x1x8x128xf32>,
    } else {
    }
    return
  }
  func.func @transform_0(%arg0: i32, %arg1: i32, %arg2: i32, %arg3: memref<4xi32, #tpu.memory_space<smem>>, %arg4: memref<4xi32, #tpu.memory_space<smem>>) -> (i32, i32) {
    %c2_i32 = arith.constant 2 : i32
    %0 = arith.muli %arg0, %c2_i32 : i32
    %1 = arith.addi %0, %arg1 : i32
    %c0_i32 = arith.constant 0 : i32
    return %1, %arg2 : i32, i32
  }
  func.func @transform_1(%arg0: i32, %arg1: i32, %arg2: i32, %arg3: memref<4xi32, #tpu.memory_space<smem>>, %arg4: memref<4xi32, #tpu.memory_space<smem>>) -> (i32, i32, i32) {
    %c2_i32 = arith.constant 2 : i32
    %0 = arith.muli %arg0, %c2_i32 : i32
    %1 = arith.addi %0, %arg1 : i32
    %2 = arith.index_cast %1 : i32 to index
    %3 = memref.load %arg3[%2] : memref<4xi32, #tpu.memory_space<smem>>
    %c0_i32 = arith.constant 0 : i32
    %c0_i32_0 = arith.constant 0 : i32
    return %3, %arg2, %c0_i32 : i32, i32, i32
  }
  func.func @transform_2(%arg0: i32, %arg1: i32, %arg2: i32, %arg3: memref<4xi32, #tpu.memory_space<smem>>, %arg4: memref<4xi32, #tpu.memory_space<smem>>) -> (i32, i32, i32, i32) {
    %c2_i32 = arith.constant 2 : i32
    %0 = arith.muli %arg0, %c2_i32 : i32
    %1 = arith.addi %0, %arg1 : i32
    %2 = arith.index_cast %1 : i32 to index
    %3 = memref.load %arg3[%2] : memref<4xi32, #tpu.memory_space<smem>>
    %c0_i32 = arith.constant 0 : i32
    %c0_i32_0 = arith.constant 0 : i32
    %c0_i32_1 = arith.constant 0 : i32
    return %arg0, %3, %c0_i32, %c0_i32_0 : i32, i32, i32, i32
  }
}

</mosaic_0001>

<llo_original>
// kernel: tpu_custom_call.1
$region0: #{tpu_custom_call.1}
  #allocation0 [shape = 'u32[]', space=smem, size = 0x4, offset = 0x4, fixed_abs, tag = 'smem constant byte address 0x4 - core index']
  #allocation1 [shape = 'u32[144,128]{1,0:T(1,128)}', space=vmem, size = 0x12000, scoped, tag = 'internal scratch']
  #allocation2 [shape = 'f32[16,128]{1,0:T(8,128)}', space=vmem, size = 0x2000, scoped, tag = 'scratch operand']
  #allocation3 [shape = 's32[1]{0}', space=sflag, size = 0x4, scoped, tag = 'scoped memory for tpu_custom_call.1']
  #allocation4 [shape = 'u8[512]{0}', space=smem, size = 0x200, scoped, tag = 'prefetched SMEM operand 0']
  #allocation5 [shape = 'u8[512]{0}', space=smem, size = 0x200, scoped, tag = 'prefetched SMEM operand 1']
  %s0 = inlined_call_operand.hbm [shape: s32[4], index: 0, kind: input, shape index: {}]
  %s1 = inlined_call_operand.vmem [shape: s32[4], index: 1, kind: input, shape index: {}]
  %s2 = inlined_call_operand.hbm [shape: f32[64,128], index: 2, kind: input, shape index: {}]
  %s3 = inlined_call_operand.hbm [shape: f32[3,128,128], index: 3, kind: input, shape index: {}]
  %s4 = inlined_call_operand.hbm [shape: f32[2,3,8,128], index: 4, kind: output, shape index: {}]
  %s5 = sld [smem:[#allocation0]]
  $region65: #{tpu_custom_call.1} parent=0
    _
  %s7 = ssub.s32 1, %s5
  %s8 = scalar_select 0, %s7, %s5
  %10 = dma.hbm_to_smem %s0, 16, [#allocation4], [#allocation3]
  %s11 = sshll.u32 %s1, 4
  %s12 = int_to_ptr.vmem [resolvable:$true] %s11
  %14 = dma.vmem_to_smem %s12, 16, [#allocation5], [#allocation3]
  %15 = dma.done [#allocation3], 32
  %16 = sfence
  $region1: #{tpu_custom_call.1} parent=0
    #allocation6 [shape = 'u8[16384]{0}', space=vmem, size = 0x4000, scoped, tag = 'input window, operand 2']
    #allocation7 [shape = 's32[2]{0}', space=sflag, size = 0x8, scoped, tag = 'scoped memory for tpu_custom_call.1']
    #allocation8 [shape = 's32[2]{0}', space=sflag, size = 0x8, scoped, tag = 'scoped memory for tpu_custom_call.1']
    #allocation9 [shape = 'u8[131072]{0}', space=vmem, size = 0x20000, scoped, tag = 'input window, operand 3']
    #allocation10 [shape = 's32[2]{0}', space=sflag, size = 0x8, scoped, tag = 'scoped memory for tpu_custom_call.1']
    #allocation11 [shape = 'u8[8192]{0}', space=vmem, size = 0x2000, scoped, tag = 'output window, operand 0']
    %17 = vsyncpa [#allocation7], 0
    %s18 = scalar_lea.sflag [#allocation7], 1
    %19 = vsyncpa %s18, 0
    %20 = vsyncpa [#allocation10], 0
    %s21 = scalar_lea.sflag [#allocation10], 1
    %22 = vsyncpa %s21, 0
    %23 = vsyncpa [#allocation8], 0
    %s24 = scalar_lea.sflag [#allocation8], 1
    %25 = vsyncpa %s24, 0
    loop: start=0, step=1, limit=6
    $region2: #{tpu_custom_call.1} parent=1 // loop_pre_header
      _
    $region3: #{tpu_custom_call.1} parent=1 // loop_header
      %s27 = sphi 0, %s31
      %p28 = scmp.ge.s32.totalorder %s27, 6
      %s34 = sphi 0, %s53
      %s35 = sphi 0, %s49
      %s36 = sphi 0, %s45
      %s37 = sphi 0, %s34
      %s38 = sphi 0, %s35
      %s39 = sphi 0, %s36
      %s40 = sphi 0, %s37
      %s41 = sphi 0, %s38
      %s42 = sphi 0, %s39
      %s62 = sphi 0, %s64
      %s65 = sphi 0, %s62
      %s66 = sphi 0, %s65
      %s82 = sphi 0, %s66
      %s96 = sphi 0, %s98
      %s99 = sphi 0, %s96
      %s100 = sphi 0, %s99
      %s116 = sphi 0, %s100
      %s130 = sphi 0, %s132
      %s133 = sphi 0, %s130
      %s134 = sphi 0, %s133
      %s150 = sphi 0, %s134
    $region4: #{tpu_custom_call.1} parent=1 // loop_header_branch
      %30 = sbr.rel (%p28) target = $region8
    $region5: #{tpu_custom_call.1} parent=1 // loop_body
      %s32 = ssub.s32 %s27, 1
      %s33 = ssub.s32 %s27, 2
      %s43 = sadd.s32 1, %s36
      %p44 = scmp.ge.s32.totalorder %s43, 1
      %s45 = scalar_select %p44, 0, %s43
      %s46 = sadd.s32 1, %s35
      %s47 = scalar_select %p44, %s46, %s35
      %p48 = scmp.ge.s32.totalorder %s47, 2
      %s49 = scalar_select %p48, 0, %s47
      %s50 = sadd.s32 1, %s34
      %s51 = scalar_select %p48, %s50, %s34
      %p52 = scmp.ge.s32.totalorder %s51, 2
      %s53 = scalar_select %p52, 0, %s51
      %s54 = smul.u32 %s34, 2
      %s55 = sadd.s32 %s54, %s35
      %s56 = smul.u32 %s53, 2
      %s57 = sadd.s32 %s56, %s49
      %s58 = ssub.s32 %s55, %s57
      %s59 = ssub.s32 %s36, %s45
      %s60 = sor.u32 %s58, %s59
      %p61 = scmp.eq.s32.totalorder %s60, 0
      %s63 = sadd.s32 %s62, 1
      %s64 = scalar_select %p61, %s62, %s63
      %p67 = pneg %p61
      %p68 = scmp.eq.s32.totalorder %s27, 3
      %p69 = por %p67, %p68
      %p70 = scmp.ne.s32.totalorder %s62, %s65
      %p71 = scmp.eq.s32.totalorder %s27, 0
      %p72 = por %p70, %p71
      %p73 = scmp.ne.s32.totalorder %s62, %s65
      %p74 = scmp.eq.s32.totalorder %s32, 3
      %p75 = por %p73, %p74
      %p76 = scmp.ne.s32.totalorder %s65, %s66
      %p77 = scmp.eq.s32.totalorder %s32, 0
      %p78 = por %p76, %p77
      %p79 = scmp.ne.s32.totalorder %s65, %s66
      %p80 = scmp.eq.s32.totalorder %s33, 3
      %p81 = por %p79, %p80
      %p83 = scmp.ne.s32.totalorder %s66, %s82
      %p84 = scmp.eq.s32.totalorder %s33, 0
      %p85 = por %p83, %p84
      %s86 = smul.u32 %s34, 2
      %s87 = sadd.s32 %s86, %s35
      %s88 = sld [smem:[#allocation4 + %s87]]
      %s89 = smul.u32 %s53, 2
      %s90 = sadd.s32 %s89, %s49
      %s91 = sld [smem:[#allocation4 + %s90]]
      %s92 = ssub.s32 %s88, %s91
      %s93 = ssub.s32 %s36, %s45
      %s94 = sor.u32 %s92, %s93
      %p95 = scmp.eq.s32.totalorder %s94, 0
      %s97 = sadd.s32 %s96, 1
      %s98 = scalar_select %p95, %s96, %s97
      %p101 = pneg %p95
      %p102 = scmp.eq.s32.totalorder %s27, 3
      %p103 = por %p101, %p102
      %p104 = scmp.ne.s32.totalorder %s96, %s99
      %p105 = scmp.eq.s32.totalorder %s27, 0
      %p106 = por %p104, %p105
      %p107 = scmp.ne.s32.totalorder %s96, %s99
      %p108 = scmp.eq.s32.totalorder %s32, 3
      %p109 = por %p107, %p108
      %p110 = scmp.ne.s32.totalorder %s99, %s100
      %p111 = scmp.eq.s32.totalorder %s32, 0
      %p112 = por %p110, %p111
      %p113 = scmp.ne.s32.totalorder %s99, %s100
      %p114 = scmp.eq.s32.totalorder %s33, 3
      %p115 = por %p113, %p114
      %p117 = scmp.ne.s32.totalorder %s100, %s116
      %p118 = scmp.eq.s32.totalorder %s33, 0
      %p119 = por %p117, %p118
      %s120 = smul.u32 %s34, 2
      %s121 = sadd.s32 %s120, %s35
      %s122 = sld [smem:[#allocation4 + %s121]]
      %s123 = smul.u32 %s53, 2
      %s124 = sadd.s32 %s123, %s49
      %s125 = sld [smem:[#allocation4 + %s124]]
      %s126 = ssub.s32 %s34, %s53
      %s127 = ssub.s32 %s122, %s125
      %s128 = sor.u32 %s126, %s127
      %p129 = scmp.eq.s32.totalorder %s128, 0
      %s131 = sadd.s32 %s130, 1
      %s132 = scalar_select %p129, %s130, %s131
      %p135 = pneg %p129
      %p136 = scmp.eq.s32.totalorder %s27, 3
      %p137 = por %p135, %p136
      %p138 = scmp.ne.s32.totalorder %s130, %s133
      %p139 = scmp.eq.s32.totalorder %s27, 0
      %p140 = por %p138, %p139
      %p141 = scmp.ne.s32.totalorder %s130, %s133
      %p142 = scmp.eq.s32.totalorder %s32, 3
      %p143 = por %p141, %p142
      %p144 = scmp.ne.s32.totalorder %s133, %s134
      %p145 = scmp.eq.s32.totalorder %s32, 0
      %p146 = por %p144, %p145
      %p147 = scmp.ne.s32.totalorder %s133, %s134
      %p148 = scmp.eq.s32.totalorder %s33, 3
      %p149 = por %p147, %p148
      %p151 = scmp.ne.s32.totalorder %s134, %s150
      %p152 = scmp.eq.s32.totalorder %s33, 0
      %p153 = por %p151, %p152
      %p154 = scmp.le.s32.totalorder 1, %s27
      %p155 = scmp.lt.s32.totalorder %s27, 5
      %p156 = pnand %p154, %p155
      %p157 = pneg %p156
      // Predicated region
      $region9: #{tpu_custom_call.1} parent=5 // pred_check
        _
      $region10: #{tpu_custom_call.1} parent=5 // pred_check_branch
        %159 = sbr.rel (%p156) target = $region12
      $region11: #{tpu_custom_call.1} parent=5 // pred_region
        %s160 = ssub.s32 %s27, 1
      $region12: #{tpu_custom_call.1} parent=5 // pred_fallthru
        _
      %p161 = scmp.lt.s32.totalorder %s27, 4
      // Predicated region
      $region13: #{tpu_custom_call.1} parent=5 // pred_check
        %p162 = pneg %p161
      $region14: #{tpu_custom_call.1} parent=5 // pred_check_branch
        %164 = sbr.rel (%p162) target = $region16
      $region15: #{tpu_custom_call.1} parent=5 // pred_region
        // Predicated region
        $region17: #{tpu_custom_call.1} parent=15 // pred_check
          %p165 = pneg %p72
        $region18: #{tpu_custom_call.1} parent=15 // pred_check_branch
          %167 = sbr.rel (%p165) target = $region20
        $region19: #{tpu_custom_call.1} parent=15 // pred_region
          %s168 = sand.u32 %s62, 1
          %s169 = scalar_lea.sflag [#allocation7], %s168
          %s170 = sand.u32 %s62, 1
          %s171 = smul.addr %s170, 16
          %s172 = scalar_lea.vmem [#allocation6], %s171
          %s173 = smul.u32 %s34, 2
          %s174 = sadd.s32 %s173, %s35
          %s175 = smul.u32 2, %s174
          %s177 = ssub.s32 256, 256
          %178 = vsyncadd %s169, %s177
          %s179 = sadd.s32 %s36, %s175
          %s180 = smul.addr %s179, 128
          %s181 = scalar_lea.hbm %s2, %s180
          %s182 = sshll.u32 %s172, 4
          %s183 = int_to_ptr.vmem [resolvable:$true] %s182
          %188 = dma.hbm_to_vmem [thread:$0]  %s181, 256, %s183, %s169, 128, 128, 8
        $region20: #{tpu_custom_call.1} parent=15 // pred_fallthru
          _
        // Predicated region
        $region21: #{tpu_custom_call.1} parent=15 // pred_check
          %p189 = pneg %p106
        $region22: #{tpu_custom_call.1} parent=15 // pred_check_branch
          %191 = sbr.rel (%p189) target = $region24
        $region23: #{tpu_custom_call.1} parent=15 // pred_region
          %s192 = sand.u32 %s96, 1
          %s193 = scalar_lea.sflag [#allocation10], %s192
          %s194 = sand.u32 %s96, 1
          %s195 = smul.addr %s194, 128
          %s196 = scalar_lea.vmem [#allocation9], %s195
          %s197 = smul.u32 %s34, 2
          %s198 = sadd.s32 %s197, %s35
          %s199 = sld [smem:[#allocation4 + %s198]]
          %s200 = smul.u32 16, %s36
          %s202 = ssub.s32 2048, 2048
          %203 = vsyncadd %s193, %s202
          %s204 = smul.addr %s199, 16
          %s205 = sadd.s32 %s200, %s204
          %s206 = smul.addr %s205, 128
          %s207 = scalar_lea.hbm %s3, %s206
          %s208 = sshll.u32 %s196, 4
          %s209 = int_to_ptr.vmem [resolvable:$true] %s208
          %214 = dma.hbm_to_vmem [thread:$0]  %s207, 2048, %s209, %s193, 128, 128, 8
        $region24: #{tpu_custom_call.1} parent=15 // pred_fallthru
          _
      $region16: #{tpu_custom_call.1} parent=5 // pred_fallthru
        _
      %p215 = scmp.le.s32.totalorder 1, %s27
      %p216 = scmp.lt.s32.totalorder %s27, 5
      %p217 = pnand %p215, %p216
      %p218 = pneg %p217
      // Predicated region
      $region25: #{tpu_custom_call.1} parent=5 // pred_check
        _
      $region26: #{tpu_custom_call.1} parent=5 // pred_check_branch
        %220 = sbr.rel (%p217) target = $region28
      $region27: #{tpu_custom_call.1} parent=5 // pred_region
        %s221 = ssub.s32 %s27, 1
        %s222 = sand.u32 %s65, 1
        %s223 = scalar_lea.sflag [#allocation7], %s222
        %s224 = sand.u32 %s65, 1
        %s225 = smul.addr %s224, 16
        %s226 = scalar_lea.vmem [#allocation6], %s225
        // Predicated region
        $region29: #{tpu_custom_call.1} parent=27 // pred_check
          %p227 = pneg %p78
        $region30: #{tpu_custom_call.1} parent=27 // pred_check_branch
          %229 = sbr.rel (%p227) target = $region32
        $region31: #{tpu_custom_call.1} parent=27 // pred_region
          %230 = dma.done %s223, 256
        $region32: #{tpu_custom_call.1} parent=27 // pred_fallthru
          _
        %s231 = sand.u32 %s99, 1
        %s232 = scalar_lea.sflag [#allocation10], %s231
        %s233 = sand.u32 %s99, 1
        %s234 = smul.addr %s233, 128
        %s235 = scalar_lea.vmem [#allocation9], %s234
        // Predicated region
        $region33: #{tpu_custom_call.1} parent=27 // pred_check
          %p236 = pneg %p112
        $region34: #{tpu_custom_call.1} parent=27 // pred_check_branch
          %238 = sbr.rel (%p236) target = $region36
        $region35: #{tpu_custom_call.1} parent=27 // pred_region
          %239 = dma.done %s232, 2048
        $region36: #{tpu_custom_call.1} parent=27 // pred_fallthru
          _
        %s240 = sand.u32 %s65, 1
        %s241 = scalar_lea.sflag [#allocation7], %s240
        %s242 = sand.u32 %s65, 1
        %s243 = smul.addr %s242, 16
        %s244 = scalar_lea.vmem [#allocation6], %s243
        %p245 = pneg %p78
        %p246 = pneg %p75
        %s247 = sand.u32 %s99, 1
        %s248 = scalar_lea.sflag [#allocation10], %s247
        %s249 = sand.u32 %s99, 1
        %s250 = smul.addr %s249, 128
        %s251 = scalar_lea.vmem [#allocation9], %s250
        %p252 = pneg %p112
        %p253 = pneg %p109
        %p254 = pneg %p146
        %p255 = pneg %p143
        %s256 = sand.u32 %s133, 1
        %s257 = scalar_lea.sflag [#allocation8], %s256
        %s258 = sand.u32 %s133, 1
        %s259 = smul.addr %s258, 8
        %s260 = scalar_lea.vmem [#allocation11], %s259
        %s261 = smul.u32 %s37, 2
        %s262 = sadd.s32 %s261, %s38
        %s263 = smul.u32 2, %s262
        %s264 = smul.u32 %s37, 2
        %s265 = sadd.s32 %s264, %s38
        %s266 = sld [smem:[#allocation4 + %s265]]
        %s267 = smul.u32 16, %s39
        %s268 = smul.u32 %s37, 2
        %s269 = sadd.s32 %s268, %s38
        %s270 = sld [smem:[#allocation4 + %s269]]
        %s271 = smul.u32 %s37, 2
        %s272 = sadd.s32 %s271, %s38
        %s273 = sld [smem:[#allocation5 + %s272]]
        %p274 = scmp.eq.s32.totalorder %s273, 1
        %p275 = scmp.eq.s32.totalorder %s39, 0
        %p276 = pnand %p274, %p275
        %p277 = pneg %p276
        // Predicated region
        $region37: #{tpu_custom_call.1} parent=27 // pred_check
          _
        $region38: #{tpu_custom_call.1} parent=27 // pred_check_branch
          %279 = sbr.rel (%p276) target = $region40
        $region39: #{tpu_custom_call.1} parent=27 // pred_region
          %280 = vst [vmem:[%s260] sm:$0xff] 0.0
        $region40: #{tpu_custom_call.1} parent=27 // pred_fallthru
          _
        %v281 = vld [vmem:[%s226] sm:$0xff]
        %v282 = vld [vmem:[%s226 + $0x8] sm:$0xff]
        %v283 = vld [vmem:[%s235] sm:$0xff]
        %v284 = vld [vmem:[%s235 + $0x8] sm:$0xff]
        %v285 = vld [vmem:[%s235 + $0x10] sm:$0xff]
        %v286 = vld [vmem:[%s235 + $0x18] sm:$0xff]
        %v287 = vld [vmem:[%s235 + $0x20] sm:$0xff]
        %v288 = vld [vmem:[%s235 + $0x28] sm:$0xff]
        %v289 = vld [vmem:[%s235 + $0x30] sm:$0xff]
        %v290 = vld [vmem:[%s235 + $0x38] sm:$0xff]
        %v291 = vld [vmem:[%s235 + $0x40] sm:$0xff]
        %v292 = vld [vmem:[%s235 + $0x48] sm:$0xff]
        %v293 = vld [vmem:[%s235 + $0x50] sm:$0xff]
        %v294 = vld [vmem:[%s235 + $0x58] sm:$0xff]
        %v295 = vld [vmem:[%s235 + $0x60] sm:$0xff]
        %v296 = vld [vmem:[%s235 + $0x68] sm:$0xff]
        %v297 = vld [vmem:[%s235 + $0x70] sm:$0xff]
        %v298 = vld [vmem:[%s235 + $0x78] sm:$0xff]
        %299 = vmatprep.subr.mxu0 0.0
        %300 = vmatpush1.msra.mxu0 %v283
        %301 = vmatprep.subr.mxu0 0.0
        %302 = vmatpush1.msra.mxu0 %v284
        %303 = vmatprep.subr.mxu0 0.0
        %304 = vmatpush1.msra.mxu0 %v285
        %305 = vmatprep.subr.mxu0 0.0
        %306 = vmatpush1.msra.mxu0 %v286
        %307 = vmatprep.subr.mxu0 0.0
        %308 = vmatpush1.msra.mxu0 %v287
        %309 = vmatprep.subr.mxu0 0.0
        %310 = vmatpush1.msra.mxu0 %v288
        %311 = vmatprep.subr.mxu0 0.0
        %312 = vmatpush1.msra.mxu0 %v289
        %313 = vmatprep.subr.mxu0 0.0
        %314 = vmatpush1.msra.mxu0 %v290
        %315 = vmatprep.subr.mxu0 0.0
        %316 = vmatpush1.msra.mxu0 %v291
        %317 = vmatprep.subr.mxu0 0.0
        %318 = vmatpush1.msra.mxu0 %v292
        %319 = vmatprep.subr.mxu0 0.0
        %320 = vmatpush1.msra.mxu0 %v293
        %321 = vmatprep.subr.mxu0 0.0
        %322 = vmatpush1.msra.mxu0 %v294
        %323 = vmatprep.subr.mxu0 0.0
        %324 = vmatpush1.msra.mxu0 %v295
        %325 = vmatprep.subr.mxu0 0.0
        %326 = vmatpush1.msra.mxu0 %v296
        %327 = vmatprep.subr.mxu0 0.0
        %328 = vmatpush1.msra.mxu0 %v297
        %329 = vmatprep.subr.mxu0 0.0
        %330 = vmatpush1.msra.mxu0 %v298
        %331 = vmatprep.subr.mxu0 0.0
        %332 = vmatpush1.msra.mxu0 0.0
        %333 = vmatprep.subr.mxu0 0.0
        %334 = vmatpush1.msra.mxu0 0.0
        %335 = vmatprep.subr.mxu0 0.0
        %336 = vmatpush1.msra.mxu0 0.0
        %337 = vmatprep.subr.mxu0 0.0
        %338 = vmatpush1.msra.mxu0 0.0
        %339 = vmatprep.subr.mxu0 0.0
        %340 = vmatpush1.msra.mxu0 0.0
        %341 = vmatprep.subr.mxu0 0.0
        %342 = vmatpush1.msra.mxu0 0.0
        %343 = vmatprep.subr.mxu0 0.0
        %344 = vmatpush1.msra.mxu0 0.0
        %345 = vmatprep.subr.mxu0 0.0
        %346 = vmatpush1.msra.mxu0 0.0
        %347 = vmatprep.subr.mxu0 0.0
        %348 = vmatpush1.msra.mxu0 0.0
        %349 = vmatprep.subr.mxu0 0.0
        %350 = vmatpush1.msra.mxu0 0.0
        %351 = vmatprep.subr.mxu0 0.0
        %352 = vmatpush1.msra.mxu0 0.0
        %353 = vmatprep.subr.mxu0 0.0
        %354 = vmatpush1.msra.mxu0 0.0
        %355 = vmatprep.subr.mxu0 0.0
        %356 = vmatpush1.msra.mxu0 0.0
        %357 = vmatprep.subr.mxu0 0.0
        %358 = vmatpush1.msra.mxu0 0.0
        %359 = vmatprep.subr.mxu0 0.0
        %360 = vmatpush1.msra.mxu0 0.0
        %361 = vmatprep.subr.mxu0 0.0
        %362 = vmatpush1.msra.mxu0 0.0
        %363 = vmatprep.mubr.f32.mxu0 0.0
        %364 = vmatmul.mubr.f32.gmra.mrb[0].mxu0 %v281
        %v365 = vpop.f32.mrb[0].mxu0
        %v366 = vadd.f32 0.0, %v365
        %v367 = vpop.f32.mrb[0].mxu0
        %368 = vmatprep.mubr.f32.mxu0 0.0
        %369 = vmatmul.mubr.f32.gmra.mrb[0].mxu0 %v282
        %v370 = vpop.f32.mrb[0].mxu0
        %v371 = vadd.f32 0.0, %v370
        %v372 = vpop.f32.mrb[0].mxu0
        %373 = vdwg.mxu0
        // Predicated region
        $region41: #{tpu_custom_call.1} parent=27 // pred_check
          %p374 = pneg %p275
        $region42: #{tpu_custom_call.1} parent=27 // pred_check_branch
          %376 = sbr.rel (%p374) target = $region44
        $region43: #{tpu_custom_call.1} parent=27 // pred_region
          %377 = vst [vmem:[#allocation2] sm:$0xff] %v366
          %378 = vst [vmem:[#allocation2 + $0x8] sm:$0xff] %v371
        $region44: #{tpu_custom_call.1} parent=27 // pred_fallthru
          _
        %p379 = scmp.gt.s32.totalorder %s39, 0
        // Predicated region
        $region45: #{tpu_custom_call.1} parent=27 // pred_check
          %p380 = pneg %p379
        $region46: #{tpu_custom_call.1} parent=27 // pred_check_branch
          %382 = sbr.rel (%p380) target = $region48
        $region47: #{tpu_custom_call.1} parent=27 // pred_region
          %v383 = vld [vmem:[#allocation2] sm:$0xff]
          %v384 = vld [vmem:[#allocation2 + $0x8] sm:$0xff]
          %v385 = vadd.f32 %v383, %v366
          %v386 = vadd.f32 %v384, %v371
          %387 = vst [vmem:[#allocation2] sm:$0xff] %v385
          %388 = vst [vmem:[#allocation2 + $0x8] sm:$0xff] %v386
        $region48: #{tpu_custom_call.1} parent=27 // pred_fallthru
          _
        // Predicated region
        $region49: #{tpu_custom_call.1} parent=27 // pred_check
          %p389 = pneg %p275
        $region50: #{tpu_custom_call.1} parent=27 // pred_check_branch
          %391 = sbr.rel (%p389) target = $region52
        $region51: #{tpu_custom_call.1} parent=27 // pred_region
          %v392 = vld [vmem:[#allocation2] sm:$0xff]
          %v393 = vld [vmem:[#allocation2 + $0x8] sm:$0xff]
          %v394 = vmul.f32 %v392, %v392
          %v395 = vmul.f32 %v393, %v393
          %v396 = vld [vmem:[%s260] sm:$0xff]
          %v397 = vadd.f32 %v394, %v395
          %v398 = vadd.f32 %v396, %v397
          %399 = vst [vmem:[%s260] sm:$0xff] %v398
        $region52: #{tpu_custom_call.1} parent=27 // pred_fallthru
          _
        %s400 = sand.u32 %s133, 1
        %s401 = scalar_lea.sflag [#allocation8], %s400
        %s402 = sand.u32 %s133, 1
        %s403 = smul.addr %s402, 8
        %s404 = scalar_lea.vmem [#allocation11], %s403
        // Predicated region
        $region53: #{tpu_custom_call.1} parent=27 // pred_check
          %p405 = pneg %p143
        $region54: #{tpu_custom_call.1} parent=27 // pred_check_branch
          %407 = sbr.rel (%p405) target = $region56
        $region55: #{tpu_custom_call.1} parent=27 // pred_region
          %s408 = smul.u32 %s37, 2
          %s409 = sadd.s32 %s408, %s38
          %s410 = sld [smem:[#allocation4 + %s409]]
          %s412 = ssub.s32 128, 128
          %413 = vsyncadd %s401, %s412
          %s414 = smul.addr %s37, 3
          %s415 = sadd.s32 %s410, %s414
          %s416 = smul.addr %s415, 128
          %s417 = scalar_lea.hbm %s4, %s416
          %s419 = sshll.u32 %s404, 4
          %s420 = int_to_ptr.vmem [resolvable:$true] %s419
          %422 = dma.vmem_to_hbm [thread:$0]  %s420, 128, %s417, %s401
        $region56: #{tpu_custom_call.1} parent=27 // pred_fallthru
          _
      $region28: #{tpu_custom_call.1} parent=5 // pred_fallthru
        _
      %p423 = scmp.le.s32.totalorder 2, %s27
      // Predicated region
      $region57: #{tpu_custom_call.1} parent=5 // pred_check
        %p424 = pneg %p423
      $region58: #{tpu_custom_call.1} parent=5 // pred_check_branch
        %426 = sbr.rel (%p424) target = $region60
      $region59: #{tpu_custom_call.1} parent=5 // pred_region
        %s427 = ssub.s32 %s27, 2
        // Predicated region
        $region61: #{tpu_custom_call.1} parent=59 // pred_check
          %p428 = pneg %p149
        $region62: #{tpu_custom_call.1} parent=59 // pred_check_branch
          %430 = sbr.rel (%p428) target = $region64
        $region63: #{tpu_custom_call.1} parent=59 // pred_region
          %s431 = sand.u32 %s134, 1
          %s432 = scalar_lea.sflag [#allocation8], %s431
          %s433 = sand.u32 %s134, 1
          %s434 = smul.addr %s433, 8
          %s435 = scalar_lea.vmem [#allocation11], %s434
          %436 = dma.done %s432, 128
        $region64: #{tpu_custom_call.1} parent=59 // pred_fallthru
          _
      $region60: #{tpu_custom_call.1} parent=5 // pred_fallthru
        _
    $region6: #{tpu_custom_call.1} parent=1 // loop_footer
      %s31 = sadd.s32 1, %s27
    $region7: #{tpu_custom_call.1} parent=1 // loop_footer_branch
      %26 = sbr.rel target = $region3
    $region8: #{tpu_custom_call.1} parent=1 // loop_exit
      _
    %437 = vsyncpa [#allocation7], 1
    %s438 = scalar_lea.sflag [#allocation7], 1
    %439 = vsyncpa %s438, 1
    %440 = vsyncpa [#allocation10], 1
    %s441 = scalar_lea.sflag [#allocation10], 1
    %442 = vsyncpa %s441, 1
    %443 = vsyncpa [#allocation8], 1
    %s444 = scalar_lea.sflag [#allocation8], 1
    %445 = vsyncpa %s444, 1

</llo_original>
